<compile_context>
chip_gen: v5e
topology: v5e:2x2
jax: 0.10.0
libtpu: 0.0.40
codegen_flags: <defaults>
</compile_context>

<pallas_src>
import jax
import jax.numpy as jnp
from jax.experimental import pallas as pl
from jax.experimental.pallas import tpu as pltpu

_LANES = 128


def _sublane_multiple(dtype) -> int:
    """Second-minor block-dim quantum for a dtype (packed sublane layouts)."""
    itemsize = jnp.dtype(dtype).itemsize
    return 8 * max(1, 4 // max(itemsize, 1))   # 8 for f32, 16 for bf16, 32 for int8


def _plan_block_rows(rows: int, itemsize: int, sub: int,
                     *, target_steps: int = 4, max_block_bytes: int = 2 << 20) -> int:
    """Rows per block: multiple of `sub`, x-block <= max_block_bytes, and the
    grid gets ~target_steps steps (2 per TC on v7x; 2-4 keeps v5e/v6e
    pipelining without paying per-step overhead on a ~us-scale kernel)."""
    cap = max(sub, (max_block_bytes // (_LANES * itemsize)) // sub * sub)
    if rows <= sub:
        return rows                       # tiny input: one full (legal) block
    block = -(-rows // target_steps)      # cdiv: aim for ~target_steps steps
    block = -(-block // sub) * sub        # round up to sublane multiple
    return max(sub, min(block, cap))


def _mul_kernel(g_ref, x_ref, o_ref):
    # g_ref: (bm, 128) f32, sigmoid already applied.  x_ref/o_ref: (bm, 128).
    # Multiply in f32 and cast the product (keeps bf16 inputs accurate).
    o_ref[...] = (g_ref[...] * x_ref[...].astype(jnp.float32)).astype(o_ref.dtype)


def sigmoid_mul(gate_nc11: jax.Array, x_nchw: jax.Array) -> jax.Array:
    """Computes sigmoid(gate) * x with NCHW in/out, matching the PyTorch module."""
    N, C, H, W = x_nchw.shape
    assert gate_nc11.shape == (N, C, 1, 1)

    out_dtype = x_nchw.dtype
    itemsize = jnp.dtype(out_dtype).itemsize
    T = N * C * H * W

    # Hoisted sigmoid (f32) + pre-expansion to the flat element stream.
    g_sig = jax.nn.sigmoid(gate_nc11.astype(jnp.float32))            # (N, C, 1, 1)
    g_flat = jnp.broadcast_to(g_sig, (N, C, H, W)).reshape(-1)       # (T,) f32
    x_flat = x_nchw.reshape(-1)                                      # (T,)

    sub = _sublane_multiple(out_dtype)
    rows = -(-T // _LANES)                                           # cdiv
    block_rows = _plan_block_rows(rows, itemsize, sub)
    grid = (-(-rows // block_rows),)                                 # ragged OK

    # Lane-dense 2-D views; pad the flat stream only when T % 128 != 0.
    t_pad = rows * _LANES
    if t_pad != T:
        x_flat = jnp.pad(x_flat, (0, t_pad - T))
        g_flat = jnp.pad(g_flat, (0, t_pad - T))
    x2 = x_flat.reshape(rows, _LANES)
    g2 = g_flat.reshape(rows, _LANES)

    # Scoped-VMEM budget: double-buffered gate(f32) + x + out blocks, + margin.
    blk_elems = block_rows * _LANES
    needed = 2 * blk_elems * (4 + 2 * itemsize)
    vmem_limit = int(min(64 << 20, max(16 << 20, needed + (4 << 20))))

    out2 = pl.pallas_call(
        _mul_kernel,
        out_shape=jax.ShapeDtypeStruct((rows, _LANES), out_dtype),
        grid=grid,
        in_specs=[
            pl.BlockSpec((block_rows, _LANES), lambda r: (r, 0)),    # gate (f32)
            pl.BlockSpec((block_rows, _LANES), lambda r: (r, 0)),    # x
        ],
        out_specs=pl.BlockSpec((block_rows, _LANES), lambda r: (r, 0)),
        compiler_params=pltpu.CompilerParams(
            dimension_semantics=("parallel",),
            vmem_limit_bytes=vmem_limit,
        ),
    )(g2, x2)

    out_flat = out2.reshape(-1)
    if t_pad != T:
        out_flat = out_flat[:T]
    return out_flat.reshape(N, C, H, W)


if __name__ == "__main__":
    key = jax.random.PRNGKey(0)

    def _check(shape):
        n, c, h, w = shape
        k1, k2 = jax.random.split(jax.random.fold_in(key, n * c * h * w))
        x = jax.random.normal(k1, (n, c, h, w), dtype=jnp.float32)   # feature map
        g = jax.random.normal(k2, (n, c, 1, 1), dtype=jnp.float32)   # SE gate logits
        out = jax.block_until_ready(sigmoid_mul(g, x))
        ref = jax.nn.sigmoid(g) * x
        assert out.shape == ref.shape
        assert jnp.allclose(out, ref, atol=1e-6, rtol=1e-6)

    # Small shapes consistent with the module (1, 3840, 7, 7) / (1, 3840, 1, 1).
    _check((1, 256, 7, 7))   # lane-dense path: 256*49 = 12544 = 98 * 128
    _check((2, 96, 7, 7))    # T % 128 != 0 path (flat padding + ragged block)

    print("KERNEL_OK")
</pallas_src>

<mosaic_0001>
module attributes {stable_mosaic.version = 11 : i64} {
  func.func @_mul_kernel(%arg0: i32, %arg1: memref<32x128xf32, #tpu.memory_space<vmem>>, %arg2: memref<32x128xf32, #tpu.memory_space<vmem>>, %arg3: memref<32x128xf32, #tpu.memory_space<vmem>>) attributes {dimension_semantics = [#tpu.dimension_semantics<parallel>], iteration_bounds = array<i64: 4>, scalar_prefetch = 0 : i64, scratch_operands = 0 : i64, tpu.core_type = #tpu.core_type<tc>, window_params = [{transform_indices = @transform_0, window_bounds = array<i64: 32, 128>}, {transform_indices = @transform_1, window_bounds = array<i64: 32, 128>}, {transform_indices = @transform_2, window_bounds = array<i64: 32, 128>}]} {
    %c0 = arith.constant 0 : index
    %c0_0 = arith.constant 0 : index
    %0 = vector.load %arg1[%c0, %c0_0] : memref<32x128xf32, #tpu.memory_space<vmem>>, vector<32x128xf32>
    %c0_1 = arith.constant 0 : index
    %c0_2 = arith.constant 0 : index
    %1 = vector.load %arg2[%c0_1, %c0_2] : memref<32x128xf32, #tpu.memory_space<vmem>>, vector<32x128xf32>
    %2 = arith.mulf %0, %1 : vector<32x128xf32>
    %c0_3 = arith.constant 0 : index
    %c0_4 = arith.constant 0 : index
    %3 = vector.load %arg3[%c0_3, %c0_4] : memref<32x128xf32, #tpu.memory_space<vmem>>, vector<32x128xf32>
    tpu.vector_store %arg3[%c0_3, %c0_4], %2 {strides = array<i32>} : memref<32x128xf32, #tpu.memory_space<vmem>>, vector<32x128xf32>,
    return
  }
  func.func @transform_0(%arg0: i32) -> (i32, i32) {
    %c0_i32 = arith.constant 0 : i32
    %c0_i32_0 = arith.constant 0 : i32
    return %arg0, %c0_i32 : i32, i32
  }
  func.func @transform_1(%arg0: i32) -> (i32, i32) {
    %c0_i32 = arith.constant 0 : i32
    %c0_i32_0 = arith.constant 0 : i32
    return %arg0, %c0_i32 : i32, i32
  }
  func.func @transform_2(%arg0: i32) -> (i32, i32) {
    %c0_i32 = arith.constant 0 : i32
    %c0_i32_0 = arith.constant 0 : i32
    return %arg0, %c0_i32 : i32, i32
  }
}

</mosaic_0001>

<llo_original>
// kernel: tpu_custom_call.1
$region0: #{tpu_custom_call.1}
  #allocation0 [shape = 'u32[]', space=smem, size = 0x4, offset = 0x4, fixed_abs, tag = 'smem constant byte address 0x4 - core index']
  #allocation1 [shape = 'u32[72,128]{1,0:T(1,128)}', space=vmem, size = 0x9000, scoped, tag = 'internal scratch']
  %s0 = inlined_call_operand.hbm [shape: f32[98,128], index: 0, kind: input, shape index: {}]
  %s1 = inlined_call_operand.hbm [shape: f32[98,128], index: 1, kind: input, shape index: {}]
  %s2 = inlined_call_operand.hbm [shape: f32[98,128], index: 2, kind: output, shape index: {}]
  %s3 = sld [smem:[#allocation0]]
  $region49: #{tpu_custom_call.1} parent=0
    _
  %s5 = ssub.s32 1, %s3
  %s6 = scalar_select 0, %s5, %s3
  $region1: #{tpu_custom_call.1} parent=0
    #allocation2 [shape = 'u8[32768]{0}', space=vmem, size = 0x8000, scoped, tag = 'input window, operand 0']
    #allocation3 [shape = 's32[2]{0}', space=sflag, size = 0x8, scoped, tag = 'scoped memory for tpu_custom_call.1']
    #allocation4 [shape = 's32[2]{0}', space=sflag, size = 0x8, scoped, tag = 'scoped memory for tpu_custom_call.1']
    #allocation5 [shape = 'u8[32768]{0}', space=vmem, size = 0x8000, scoped, tag = 'input window, operand 1']
    #allocation6 [shape = 's32[2]{0}', space=sflag, size = 0x8, scoped, tag = 'scoped memory for tpu_custom_call.1']
    #allocation7 [shape = 'u8[32768]{0}', space=vmem, size = 0x8000, scoped, tag = 'output window, operand 0']
    %7 = vsyncpa [#allocation3], 0
    %s8 = scalar_lea.sflag [#allocation3], 1
    %9 = vsyncpa %s8, 0
    %10 = vsyncpa [#allocation6], 0
    %s11 = scalar_lea.sflag [#allocation6], 1
    %12 = vsyncpa %s11, 0
    %13 = vsyncpa [#allocation4], 0
    %s14 = scalar_lea.sflag [#allocation4], 1
    %15 = vsyncpa %s14, 0
    loop: start=0, step=1, limit=6
    $region2: #{tpu_custom_call.1} parent=1 // loop_pre_header
      _
    $region3: #{tpu_custom_call.1} parent=1 // loop_header
      %s17 = sphi 0, %s21
      %p18 = scmp.ge.s32.totalorder %s17, 6
      %s27 = sphi 0, %s29
      %s30 = sphi 0, %s27
      %s31 = sphi 0, %s30
      %s47 = sphi 0, %s31
      %s53 = sphi 0, %s55
      %s56 = sphi 0, %s53
      %s57 = sphi 0, %s56
      %s73 = sphi 0, %s57
      %s79 = sphi 0, %s81
      %s82 = sphi 0, %s79
      %s83 = sphi 0, %s82
      %s99 = sphi 0, %s83
    $region4: #{tpu_custom_call.1} parent=1 // loop_header_branch
      %20 = sbr.rel (%p18) target = $region8
    $region5: #{tpu_custom_call.1} parent=1 // loop_body
      %s22 = ssub.s32 %s17, 1
      %s23 = ssub.s32 %s17, 2
      %s24 = sadd.s32 %s17, 1
      %s25 = ssub.s32 %s17, %s24
      %p26 = scmp.eq.s32.totalorder %s25, 0
      %s28 = sadd.s32 %s27, 1
      %s29 = scalar_select %p26, %s27, %s28
      %p32 = pneg %p26
      %p33 = scmp.eq.s32.totalorder %s17, 3
      %p34 = por %p32, %p33
      %p35 = scmp.ne.s32.totalorder %s27, %s30
      %p36 = scmp.eq.s32.totalorder %s17, 0
      %p37 = por %p35, %p36
      %p38 = scmp.ne.s32.totalorder %s27, %s30
      %p39 = scmp.eq.s32.totalorder %s22, 3
      %p40 = por %p38, %p39
      %p41 = scmp.ne.s32.totalorder %s30, %s31
      %p42 = scmp.eq.s32.totalorder %s22, 0
      %p43 = por %p41, %p42
      %p44 = scmp.ne.s32.totalorder %s30, %s31
      %p45 = scmp.eq.s32.totalorder %s23, 3
      %p46 = por %p44, %p45
      %p48 = scmp.ne.s32.totalorder %s31, %s47
      %p49 = scmp.eq.s32.totalorder %s23, 0
      %p50 = por %p48, %p49
      %s51 = ssub.s32 %s17, %s24
      %p52 = scmp.eq.s32.totalorder %s51, 0
      %s54 = sadd.s32 %s53, 1
      %s55 = scalar_select %p52, %s53, %s54
      %p58 = pneg %p52
      %p59 = scmp.eq.s32.totalorder %s17, 3
      %p60 = por %p58, %p59
      %p61 = scmp.ne.s32.totalorder %s53, %s56
      %p62 = scmp.eq.s32.totalorder %s17, 0
      %p63 = por %p61, %p62
      %p64 = scmp.ne.s32.totalorder %s53, %s56
      %p65 = scmp.eq.s32.totalorder %s22, 3
      %p66 = por %p64, %p65
      %p67 = scmp.ne.s32.totalorder %s56, %s57
      %p68 = scmp.eq.s32.totalorder %s22, 0
      %p69 = por %p67, %p68
      %p70 = scmp.ne.s32.totalorder %s56, %s57
      %p71 = scmp.eq.s32.totalorder %s23, 3
      %p72 = por %p70, %p71
      %p74 = scmp.ne.s32.totalorder %s57, %s73
      %p75 = scmp.eq.s32.totalorder %s23, 0
      %p76 = por %p74, %p75
      %s77 = ssub.s32 %s17, %s24
      %p78 = scmp.eq.s32.totalorder %s77, 0
      %s80 = sadd.s32 %s79, 1
      %s81 = scalar_select %p78, %s79, %s80
      %p84 = pneg %p78
      %p85 = scmp.eq.s32.totalorder %s17, 3
      %p86 = por %p84, %p85
      %p87 = scmp.ne.s32.totalorder %s79, %s82
      %p88 = scmp.eq.s32.totalorder %s17, 0
      %p89 = por %p87, %p88
      %p90 = scmp.ne.s32.totalorder %s79, %s82
      %p91 = scmp.eq.s32.totalorder %s22, 3
      %p92 = por %p90, %p91
      %p93 = scmp.ne.s32.totalorder %s82, %s83
      %p94 = scmp.eq.s32.totalorder %s22, 0
      %p95 = por %p93, %p94
      %p96 = scmp.ne.s32.totalorder %s82, %s83
      %p97 = scmp.eq.s32.totalorder %s23, 3
      %p98 = por %p96, %p97
      %p100 = scmp.ne.s32.totalorder %s83, %s99
      %p101 = scmp.eq.s32.totalorder %s23, 0
      %p102 = por %p100, %p101
      %p103 = scmp.le.s32.totalorder 1, %s17
      %p104 = scmp.lt.s32.totalorder %s17, 5
      %p105 = pnand %p103, %p104
      %p106 = pneg %p105
      // Predicated region
      $region9: #{tpu_custom_call.1} parent=5 // pred_check
        _
      $region10: #{tpu_custom_call.1} parent=5 // pred_check_branch
        %108 = sbr.rel (%p105) target = $region12
      $region11: #{tpu_custom_call.1} parent=5 // pred_region
        %s109 = ssub.s32 %s17, 1
      $region12: #{tpu_custom_call.1} parent=5 // pred_fallthru
        _
      %p110 = scmp.lt.s32.totalorder %s17, 4
      // Predicated region
      $region13: #{tpu_custom_call.1} parent=5 // pred_check
        %p111 = pneg %p110
      $region14: #{tpu_custom_call.1} parent=5 // pred_check_branch
        %113 = sbr.rel (%p111) target = $region16
      $region15: #{tpu_custom_call.1} parent=5 // pred_region
        // Predicated region
        $region17: #{tpu_custom_call.1} parent=15 // pred_check
          %p114 = pneg %p37
        $region18: #{tpu_custom_call.1} parent=15 // pred_check_branch
          %116 = sbr.rel (%p114) target = $region20
        $region19: #{tpu_custom_call.1} parent=15 // pred_region
          %s117 = sand.u32 %s27, 1
          %s118 = scalar_lea.sflag [#allocation3], %s117
          %s119 = sand.u32 %s27, 1
          %s120 = smul.addr %s119, 32
          %s121 = scalar_lea.vmem [#allocation2], %s120
          %s122 = smul.u32 4, %s17
          %s123 = ssub.s32 13, %s122
          %p124 = scmp.lt.s32.totalorder %s123, 4
          %s125 = scalar_select %p124, %s123, 4
          %s126 = smul.u32 8, %s125
          %s127 = ssub.s32 32, %s126
          %s128 = sshll.u32 %s127, 4
          %129 = vsyncadd %s118, %s128
          %p130 = scmp.ne.s32.totalorder 0, %s126
          %s131 = smul.addr %s122, 8
          %s132 = scalar_lea.hbm %s0, %s131
          %s133 = smul.u32 8, %s125
          %s134 = sshll.u32 %s132, 4
          %s135 = int_to_ptr.hbm [resolvable:$true] %s134
          %s136 = sshll.u32 %s121, 4
          %s137 = int_to_ptr.vmem [resolvable:$true] %s136
          %s138 = sshll.u32 %s133, 4
          %142 = dma.hbm_to_vmem [thread:$0]  (%p130), %s135, %s138, %s137, %s118, 128, 128, 8
        $region20: #{tpu_custom_call.1} parent=15 // pred_fallthru
          _
        // Predicated region
        $region21: #{tpu_custom_call.1} parent=15 // pred_check
          %p143 = pneg %p63
        $region22: #{tpu_custom_call.1} parent=15 // pred_check_branch
          %145 = sbr.rel (%p143) target = $region24
        $region23: #{tpu_custom_call.1} parent=15 // pred_region
          %s146 = sand.u32 %s53, 1
          %s147 = scalar_lea.sflag [#allocation6], %s146
          %s148 = sand.u32 %s53, 1
          %s149 = smul.addr %s148, 32
          %s150 = scalar_lea.vmem [#allocation5], %s149
          %s151 = smul.u32 4, %s17
          %s152 = ssub.s32 13, %s151
          %p153 = scmp.lt.s32.totalorder %s152, 4
          %s154 = scalar_select %p153, %s152, 4
          %s155 = smul.u32 8, %s154
          %s156 = ssub.s32 32, %s155
          %s157 = sshll.u32 %s156, 4
          %158 = vsyncadd %s147, %s157
          %p159 = scmp.ne.s32.totalorder 0, %s155
          %s160 = smul.addr %s151, 8
          %s161 = scalar_lea.hbm %s1, %s160
          %s162 = smul.u32 8, %s154
          %s163 = sshll.u32 %s161, 4
          %s164 = int_to_ptr.hbm [resolvable:$true] %s163
          %s165 = sshll.u32 %s150, 4
          %s166 = int_to_ptr.vmem [resolvable:$true] %s165
          %s167 = sshll.u32 %s162, 4
          %171 = dma.hbm_to_vmem [thread:$0]  (%p159), %s164, %s167, %s166, %s147, 128, 128, 8
        $region24: #{tpu_custom_call.1} parent=15 // pred_fallthru
          _
      $region16: #{tpu_custom_call.1} parent=5 // pred_fallthru
        _
      %p172 = scmp.le.s32.totalorder 1, %s17
      %p173 = scmp.lt.s32.totalorder %s17, 5
      %p174 = pnand %p172, %p173
      %p175 = pneg %p174
      // Predicated region
      $region25: #{tpu_custom_call.1} parent=5 // pred_check
        _
      $region26: #{tpu_custom_call.1} parent=5 // pred_check_branch
        %177 = sbr.rel (%p174) target = $region28
      $region27: #{tpu_custom_call.1} parent=5 // pred_region
        %s178 = ssub.s32 %s17, 1
        %s179 = sand.u32 %s30, 1
        %s180 = scalar_lea.sflag [#allocation3], %s179
        %s181 = sand.u32 %s30, 1
        %s182 = smul.addr %s181, 32
        %s183 = scalar_lea.vmem [#allocation2], %s182
        // Predicated region
        $region29: #{tpu_custom_call.1} parent=27 // pred_check
          %p184 = pneg %p43
        $region30: #{tpu_custom_call.1} parent=27 // pred_check_branch
          %186 = sbr.rel (%p184) target = $region32
        $region31: #{tpu_custom_call.1} parent=27 // pred_region
          %188 = dma.done %s180, 512
        $region32: #{tpu_custom_call.1} parent=27 // pred_fallthru
          _
        %s189 = sand.u32 %s56, 1
        %s190 = scalar_lea.sflag [#allocation6], %s189
        %s191 = sand.u32 %s56, 1
        %s192 = smul.addr %s191, 32
        %s193 = scalar_lea.vmem [#allocation5], %s192
        // Predicated region
        $region33: #{tpu_custom_call.1} parent=27 // pred_check
          %p194 = pneg %p69
        $region34: #{tpu_custom_call.1} parent=27 // pred_check_branch
          %196 = sbr.rel (%p194) target = $region36
        $region35: #{tpu_custom_call.1} parent=27 // pred_region
          %198 = dma.done %s190, 512
        $region36: #{tpu_custom_call.1} parent=27 // pred_fallthru
          _
        %s199 = sand.u32 %s30, 1
        %s200 = scalar_lea.sflag [#allocation3], %s199
        %s201 = sand.u32 %s30, 1
        %s202 = smul.addr %s201, 32
        %s203 = scalar_lea.vmem [#allocation2], %s202
        %p204 = pneg %p43
        %p205 = pneg %p40
        %s206 = sand.u32 %s56, 1
        %s207 = scalar_lea.sflag [#allocation6], %s206
        %s208 = sand.u32 %s56, 1
        %s209 = smul.addr %s208, 32
        %s210 = scalar_lea.vmem [#allocation5], %s209
        %p211 = pneg %p69
        %p212 = pneg %p66
        %p213 = pneg %p95
        %p214 = pneg %p92
        %s215 = sand.u32 %s82, 1
        %s216 = scalar_lea.sflag [#allocation4], %s215
        %s217 = sand.u32 %s82, 1
        %s218 = smul.addr %s217, 32
        %s219 = scalar_lea.vmem [#allocation7], %s218
        %s220 = smul.u32 4, %s22
        %s221 = ssub.s32 13, %s220
        %p222 = scmp.lt.s32.totalorder %s221, 4
        %s223 = scalar_select %p222, %s221, 4
        %s224 = smul.u32 8, %s223
        %s225 = smul.u32 4, %s22
        %s226 = ssub.s32 13, %s225
        %p227 = scmp.lt.s32.totalorder %s226, 4
        %s228 = scalar_select %p227, %s226, 4
        %s229 = smul.u32 8, %s228
        %s230 = smul.u32 4, %s22
        %s231 = ssub.s32 13, %s230
        %p232 = scmp.lt.s32.totalorder %s231, 4
        %s233 = scalar_select %p232, %s231, 4
        %s234 = smul.u32 8, %s233
        %v235 = vld [vmem:[%s183] sm:$0xff]
        %v236 = vld [vmem:[%s183 + $0x8] sm:$0xff]
        %v237 = vld [vmem:[%s183 + $0x10] sm:$0xff]
        %v238 = vld [vmem:[%s183 + $0x18] sm:$0xff]
        %v239 = vld [vmem:[%s193] sm:$0xff]
        %v240 = vld [vmem:[%s193 + $0x8] sm:$0xff]
        %v241 = vld [vmem:[%s193 + $0x10] sm:$0xff]
        %v242 = vld [vmem:[%s193 + $0x18] sm:$0xff]
        %v243 = vmul.f32 %v235, %v239
        %v244 = vmul.f32 %v236, %v240
        %v245 = vmul.f32 %v237, %v241
        %v246 = vmul.f32 %v238, %v242
        %247 = vst [vmem:[%s219] sm:$0xff] %v243
        %248 = vst [vmem:[%s219 + $0x8] sm:$0xff] %v244
        %249 = vst [vmem:[%s219 + $0x10] sm:$0xff] %v245
        %250 = vst [vmem:[%s219 + $0x18] sm:$0xff] %v246
        %s251 = sand.u32 %s82, 1
        %s252 = scalar_lea.sflag [#allocation4], %s251
        %s253 = sand.u32 %s82, 1
        %s254 = smul.addr %s253, 32
        %s255 = scalar_lea.vmem [#allocation7], %s254
        // Predicated region
        $region37: #{tpu_custom_call.1} parent=27 // pred_check
          %p256 = pneg %p92
        $region38: #{tpu_custom_call.1} parent=27 // pred_check_branch
          %258 = sbr.rel (%p256) target = $region40
        $region39: #{tpu_custom_call.1} parent=27 // pred_region
          %s259 = smul.u32 4, %s22
          %s260 = ssub.s32 13, %s259
          %p261 = scmp.lt.s32.totalorder %s260, 4
          %s262 = scalar_select %p261, %s260, 4
          %s263 = smul.u32 8, %s262
          %s264 = ssub.s32 32, %s263
          %s265 = sshll.u32 %s264, 4
          %266 = vsyncadd %s252, %s265
          %p267 = scmp.ne.s32.totalorder 0, %s263
          %s268 = smul.addr %s259, 8
          %s269 = scalar_lea.hbm %s2, %s268
          %s270 = smul.u32 8, %s262
          %s271 = sshll.u32 %s255, 4
          %s272 = int_to_ptr.vmem [resolvable:$true] %s271
          %s273 = sshll.u32 %s269, 4
          %s274 = int_to_ptr.hbm [resolvable:$true] %s273
          %s275 = sshll.u32 %s270, 4
          %279 = dma.vmem_to_hbm [thread:$0]  (%p267), %s272, %s275, %s274, %s252, 128, 128, 8
        $region40: #{tpu_custom_call.1} parent=27 // pred_fallthru
          _
      $region28: #{tpu_custom_call.1} parent=5 // pred_fallthru
        _
      %p280 = scmp.le.s32.totalorder 2, %s17
      // Predicated region
      $region41: #{tpu_custom_call.1} parent=5 // pred_check
        %p281 = pneg %p280
      $region42: #{tpu_custom_call.1} parent=5 // pred_check_branch
        %283 = sbr.rel (%p281) target = $region44
      $region43: #{tpu_custom_call.1} parent=5 // pred_region
        %s284 = ssub.s32 %s17, 2
        // Predicated region
        $region45: #{tpu_custom_call.1} parent=43 // pred_check
          %p285 = pneg %p98
        $region46: #{tpu_custom_call.1} parent=43 // pred_check_branch
          %287 = sbr.rel (%p285) target = $region48
        $region47: #{tpu_custom_call.1} parent=43 // pred_region
          %s288 = sand.u32 %s83, 1
          %s289 = scalar_lea.sflag [#allocation4], %s288
          %s290 = sand.u32 %s83, 1
          %s291 = smul.addr %s290, 32
          %s292 = scalar_lea.vmem [#allocation7], %s291
          %294 = dma.done %s289, 512
        $region48: #{tpu_custom_call.1} parent=43 // pred_fallthru
          _
      $region44: #{tpu_custom_call.1} parent=5 // pred_fallthru
        _
    $region6: #{tpu_custom_call.1} parent=1 // loop_footer
      %s21 = sadd.s32 1, %s17
    $region7: #{tpu_custom_call.1} parent=1 // loop_footer_branch
      %16 = sbr.rel target = $region3
    $region8: #{tpu_custom_call.1} parent=1 // loop_exit
      _
    %295 = vsyncpa [#allocation3], 1
    %s296 = scalar_lea.sflag [#allocation3], 1
    %297 = vsyncpa %s296, 1
    %298 = vsyncpa [#allocation6], 1
    %s299 = scalar_lea.sflag [#allocation6], 1
    %300 = vsyncpa %s299, 1
    %301 = vsyncpa [#allocation4], 1
    %s302 = scalar_lea.sflag [#allocation4], 1
    %303 = vsyncpa %s302, 1

</llo_original>
